<compile_context>
chip_gen: v6e
topology: v6e:2x2x1
jax: 0.10.0
libtpu: 0.0.40
codegen_flags: <defaults>
</compile_context>

<pallas_src>
import jax
import jax.numpy as jnp
from jax.experimental import pallas as pl
from jax.experimental.pallas import tpu as pltpu

INPUT_SIZE = 20
HIDDEN_SIZES = [50, 50]
OUTPUT_SIZE = 1

LANE = 128               # TPU lane width
MAX_BATCH_BLOCK = 1024   # columns per grid step; 2 bufs * (20+1)*1024*4B << 64 MiB (v7x)


def mlp_kernel(x_ref, w0_ref, b0_ref, w1_ref, b1_ref, w2_ref, b2_ref, o_ref):
    # x_ref: (20, bt) | w0: (50, 20) | b0: (50, 1) | w1: (50, 50) | b1: (50, 1)
    # w2: (1, 50)     | b2: (1, 1)   | o_ref: (1, bt)
    x = x_ref[...]

    h0 = jnp.dot(w0_ref[...], x, preferred_element_type=jnp.float32) + b0_ref[...]
    h0 = jnp.maximum(h0, 0.0)                                   # ReLU (VPU)

    h1 = jnp.dot(w1_ref[...], h0, preferred_element_type=jnp.float32) + b1_ref[...]
    h1 = jnp.maximum(h1, 0.0)                                   # ReLU (VPU)

    logit = jnp.dot(w2_ref[...], h1, preferred_element_type=jnp.float32) + b2_ref[...]

    # Sigmoid: exp on the EUP; exact reciprocal keeps bitwise-tight accuracy
    # (pl.reciprocal(..., approx=True) would route the divide to the EUP too at ~1e-4 error).
    o_ref[...] = pl.reciprocal(1.0 + jnp.exp(-logit), approx=False)


def _round_up(n, m):
    return ((n + m - 1) // m) * m


def simple_model_forward(x, params, *, max_block=MAX_BATCH_BLOCK):
    """x: (B, 20) f32.  params: [(W(out,in), b(out,1)), ...] PyTorch-style.  Returns (B, 1)."""
    (w0, b0), (w1, b1), (w2, b2) = params
    B = x.shape[0]

    # Batch lives on lanes -> pad to a lane-aligned tile size and transpose.
    bt = min(max_block, _round_up(B, LANE))
    b_pad = _round_up(B, bt)
    xt = jnp.pad(x.T.astype(jnp.float32), ((0, 0), (0, b_pad - B)))   # (20, B_pad)

    grid = (b_pad // bt,)

    full = lambda arr: pl.BlockSpec(arr.shape, lambda i: (0, 0))      # VMEM-resident params

    out_t = pl.pallas_call(
        mlp_kernel,
        out_shape=jax.ShapeDtypeStruct((OUTPUT_SIZE, b_pad), jnp.float32),
        grid_spec=pltpu.PrefetchScalarGridSpec(
            num_scalar_prefetch=0,
            grid=grid,
            in_specs=[
                pl.BlockSpec((INPUT_SIZE, bt), lambda i: (0, i)),     # x tile, pipelined
                full(w0), full(b0),
                full(w1), full(b1),
                full(w2), full(b2),
            ],
            out_specs=pl.BlockSpec((OUTPUT_SIZE, bt), lambda i: (0, i)),  # lane-dense store
        ),
        compiler_params=pltpu.CompilerParams(
            dimension_semantics=("parallel",),          # megacore sharding on v7x
            vmem_limit_bytes=32 * 1024 * 1024,          # explicit; tiles use far less
        ),
    )(xt, w0, b0, w1, b1, w2, b2)

    return out_t[:, :B].T                               # back to (B, 1) PyTorch layout


def init_params(key):
    """nn.Linear-style init: W (out, in), b (out, 1), uniform(-1/sqrt(fan_in), 1/sqrt(fan_in))."""
    sizes = [INPUT_SIZE] + HIDDEN_SIZES + [OUTPUT_SIZE]
    params = []
    for fan_in, fan_out in zip(sizes[:-1], sizes[1:]):
        key, kw, kb = jax.random.split(key, 3)
        bound = 1.0 / jnp.sqrt(float(fan_in))
        w = jax.random.uniform(kw, (fan_out, fan_in), jnp.float32, -bound, bound)
        b = jax.random.uniform(kb, (fan_out, 1), jnp.float32, -bound, bound)
        params.append((w, b))
    return params


def reference_forward(x, params):
    (w0, b0), (w1, b1), (w2, b2) = params
    h0 = jnp.maximum(x @ w0.T + b0.T, 0.0)
    h1 = jnp.maximum(h0 @ w1.T + b1.T, 0.0)
    z = h1 @ w2.T + b2.T
    return 1.0 / (1.0 + jnp.exp(-z))


if __name__ == "__main__":
    key = jax.random.PRNGKey(0)
    key, kx = jax.random.split(key)
    batch = 8
    x = jax.random.normal(kx, (batch, INPUT_SIZE), jnp.float32)

    params = init_params(key)

    out = simple_model_forward(x, params)
    out = jax.block_until_ready(out)

    ref = reference_forward(x, params)
    assert out.shape == (batch, OUTPUT_SIZE)
    assert jnp.allclose(out, ref, atol=1e-5, rtol=1e-5)

    print("KERNEL_OK")
</pallas_src>

<mosaic_0001>
module attributes {stable_mosaic.version = 11 : i64} {
  func.func @mlp_kernel(%arg0: i32, %arg1: memref<20x128xf32, #tpu.memory_space<vmem>>, %arg2: memref<50x20xf32, #tpu.memory_space<vmem>>, %arg3: memref<50x1xf32, #tpu.memory_space<vmem>>, %arg4: memref<50x50xf32, #tpu.memory_space<vmem>>, %arg5: memref<50x1xf32, #tpu.memory_space<vmem>>, %arg6: memref<1x50xf32, #tpu.memory_space<vmem>>, %arg7: memref<1x1xf32, #tpu.memory_space<vmem>>, %arg8: memref<1x128xf32, #tpu.memory_space<vmem>>) attributes {dimension_semantics = [#tpu.dimension_semantics<parallel>], iteration_bounds = array<i64: 1>, scalar_prefetch = 0 : i64, scratch_operands = 0 : i64, tpu.core_type = #tpu.core_type<tc>, window_params = [{transform_indices = @transform_0, window_bounds = array<i64: 20, 128>}, {pipeline_mode = #tpu.pipeline_mode<synchronous>, transform_indices = @transform_1, window_bounds = array<i64: 50, 20>}, {pipeline_mode = #tpu.pipeline_mode<synchronous>, transform_indices = @transform_2, window_bounds = array<i64: 50, 1>}, {pipeline_mode = #tpu.pipeline_mode<synchronous>, transform_indices = @transform_3, window_bounds = array<i64: 50, 50>}, {pipeline_mode = #tpu.pipeline_mode<synchronous>, transform_indices = @transform_4, window_bounds = array<i64: 50, 1>}, {pipeline_mode = #tpu.pipeline_mode<synchronous>, transform_indices = @transform_5, window_bounds = array<i64: 1, 50>}, {pipeline_mode = #tpu.pipeline_mode<synchronous>, transform_indices = @transform_6, window_bounds = array<i64: 1, 1>}, {transform_indices = @transform_7, window_bounds = array<i64: 1, 128>}]} {
    %c0 = arith.constant 0 : index
    %c0_0 = arith.constant 0 : index
    %0 = vector.load %arg1[%c0, %c0_0] : memref<20x128xf32, #tpu.memory_space<vmem>>, vector<20x128xf32>
    %c0_1 = arith.constant 0 : index
    %c0_2 = arith.constant 0 : index
    %1 = vector.load %arg2[%c0_1, %c0_2] : memref<50x20xf32, #tpu.memory_space<vmem>>, vector<50x20xf32>
    %cst = arith.constant dense<0.000000e+00> : vector<50x128xf32>
    %2 = tpu.matmul %1, %0, %cst {dimension_numbers = #tpu.dot_dimension_numbers<[1], [0], [0], [1], [0, 0, 1, 1], [], []>} : vector<50x20xf32>, vector<20x128xf32>, vector<50x128xf32> -> vector<50x128xf32>
    %c0_3 = arith.constant 0 : index
    %c0_4 = arith.constant 0 : index
    %3 = vector.load %arg3[%c0_3, %c0_4] : memref<50x1xf32, #tpu.memory_space<vmem>>, vector<50x1xf32>
    %4 = vector.broadcast %3 : vector<50x1xf32> to vector<50x128xf32>
    %5 = arith.addf %2, %4 : vector<50x128xf32>
    %cst_5 = arith.constant 0.000000e+00 : f32
    %6 = vector.broadcast %cst_5 : f32 to vector<50x128xf32>
    %7 = arith.maximumf %5, %6 : vector<50x128xf32>
    %c0_6 = arith.constant 0 : index
    %c0_7 = arith.constant 0 : index
    %8 = vector.load %arg4[%c0_6, %c0_7] : memref<50x50xf32, #tpu.memory_space<vmem>>, vector<50x50xf32>
    %cst_8 = arith.constant dense<0.000000e+00> : vector<50x128xf32>
    %9 = tpu.matmul %8, %7, %cst_8 {dimension_numbers = #tpu.dot_dimension_numbers<[1], [0], [0], [1], [0, 0, 1, 1], [], []>} : vector<50x50xf32>, vector<50x128xf32>, vector<50x128xf32> -> vector<50x128xf32>
    %c0_9 = arith.constant 0 : index
    %c0_10 = arith.constant 0 : index
    %10 = vector.load %arg5[%c0_9, %c0_10] : memref<50x1xf32, #tpu.memory_space<vmem>>, vector<50x1xf32>
    %11 = vector.broadcast %10 : vector<50x1xf32> to vector<50x128xf32>
    %12 = arith.addf %9, %11 : vector<50x128xf32>
    %cst_11 = arith.constant 0.000000e+00 : f32
    %13 = vector.broadcast %cst_11 : f32 to vector<50x128xf32>
    %14 = arith.maximumf %12, %13 : vector<50x128xf32>
    %c0_12 = arith.constant 0 : index
    %c0_13 = arith.constant 0 : index
    %15 = vector.load %arg6[%c0_12, %c0_13] : memref<1x50xf32, #tpu.memory_space<vmem>>, vector<1x50xf32>
    %cst_14 = arith.constant dense<0.000000e+00> : vector<1x128xf32>
    %16 = tpu.matmul %15, %14, %cst_14 {dimension_numbers = #tpu.dot_dimension_numbers<[1], [0], [0], [1], [0, 0, 1, 1], [], []>} : vector<1x50xf32>, vector<50x128xf32>, vector<1x128xf32> -> vector<1x128xf32>
    %c0_15 = arith.constant 0 : index
    %c0_16 = arith.constant 0 : index
    %17 = vector.load %arg7[%c0_15, %c0_16] : memref<1x1xf32, #tpu.memory_space<vmem>>, vector<1x1xf32>
    %18 = vector.broadcast %17 : vector<1x1xf32> to vector<1x128xf32>
    %19 = arith.addf %16, %18 : vector<1x128xf32>
    %cst_17 = arith.constant 0.000000e+00 : f32
    %20 = vector.broadcast %cst_17 : f32 to vector<1x128xf32>
    %21 = arith.subf %20, %19 : vector<1x128xf32>
    %22 = math.exp %21 : vector<1x128xf32>
    %cst_18 = arith.constant 1.000000e+00 : f32
    %23 = vector.broadcast %cst_18 : f32 to vector<1x128xf32>
    %24 = arith.addf %23, %22 : vector<1x128xf32>
    %25 = tpu.reciprocal %24 : vector<1x128xf32> -> vector<1x128xf32>
    %c0_19 = arith.constant 0 : index
    %c0_20 = arith.constant 0 : index
    %26 = vector.load %arg8[%c0_19, %c0_20] : memref<1x128xf32, #tpu.memory_space<vmem>>, vector<1x128xf32>
    tpu.vector_store %arg8[%c0_19, %c0_20], %25 {strides = array<i32>} : memref<1x128xf32, #tpu.memory_space<vmem>>, vector<1x128xf32>,
    return
  }
  func.func @transform_0(%arg0: i32) -> (i32, i32) {
    %c0_i32 = arith.constant 0 : i32
    %c0_i32_0 = arith.constant 0 : i32
    return %c0_i32, %arg0 : i32, i32
  }
  func.func @transform_1(%arg0: i32) -> (i32, i32) {
    %c0_i32 = arith.constant 0 : i32
    %c0_i32_0 = arith.constant 0 : i32
    %c0_i32_1 = arith.constant 0 : i32
    return %c0_i32, %c0_i32_0 : i32, i32
  }
  func.func @transform_2(%arg0: i32) -> (i32, i32) {
    %c0_i32 = arith.constant 0 : i32
    %c0_i32_0 = arith.constant 0 : i32
    %c0_i32_1 = arith.constant 0 : i32
    return %c0_i32, %c0_i32_0 : i32, i32
  }
  func.func @transform_3(%arg0: i32) -> (i32, i32) {
    %c0_i32 = arith.constant 0 : i32
    %c0_i32_0 = arith.constant 0 : i32
    %c0_i32_1 = arith.constant 0 : i32
    return %c0_i32, %c0_i32_0 : i32, i32
  }
  func.func @transform_4(%arg0: i32) -> (i32, i32) {
    %c0_i32 = arith.constant 0 : i32
    %c0_i32_0 = arith.constant 0 : i32
    %c0_i32_1 = arith.constant 0 : i32
    return %c0_i32, %c0_i32_0 : i32, i32
  }
  func.func @transform_5(%arg0: i32) -> (i32, i32) {
    %c0_i32 = arith.constant 0 : i32
    %c0_i32_0 = arith.constant 0 : i32
    %c0_i32_1 = arith.constant 0 : i32
    return %c0_i32, %c0_i32_0 : i32, i32
  }
  func.func @transform_6(%arg0: i32) -> (i32, i32) {
    %c0_i32 = arith.constant 0 : i32
    %c0_i32_0 = arith.constant 0 : i32
    %c0_i32_1 = arith.constant 0 : i32
    return %c0_i32, %c0_i32_0 : i32, i32
  }
  func.func @transform_7(%arg0: i32) -> (i32, i32) {
    %c0_i32 = arith.constant 0 : i32
    %c0_i32_0 = arith.constant 0 : i32
    return %c0_i32, %arg0 : i32, i32
  }
}

</mosaic_0001>

<llo_original>
// kernel: tpu_custom_call.1
$region0: #{tpu_custom_call.1}
  #allocation0 [shape = 'u32[]', space=smem, size = 0x4, offset = 0x4, fixed_abs, tag = 'smem constant byte address 0x4 - core index']
  #allocation1 [shape = 'u32[144,128]{1,0:T(1,128)}', space=vmem, size = 0x12000, scoped, tag = 'internal scratch']
  #allocation2 [shape = 'f32[1,1]{1,0:T(1,128)S(1)}', space=vmem, size = 0x200, scoped, tag = 'scoped memory for tpu_custom_call.1']
  %s0 = inlined_call_operand.vmem [shape: f32[20,128], index: 0, kind: input, shape index: {}]
  %s1 = inlined_call_operand.vmem [shape: f32[50,20], index: 1, kind: input, shape index: {}]
  %s2 = inlined_call_operand.vmem [shape: f32[50,1], index: 2, kind: input, shape index: {}]
  %s3 = inlined_call_operand.vmem [shape: f32[50,50], index: 3, kind: input, shape index: {}]
  %s4 = inlined_call_operand.vmem [shape: f32[50,1], index: 4, kind: input, shape index: {}]
  %s5 = inlined_call_operand.vmem [shape: f32[1,50], index: 5, kind: input, shape index: {}]
  %s6 = inlined_call_operand.<no memory space> [shape: f32[1,1], index: 6, kind: input, shape index: {}]
  %s7 = inlined_call_operand.hbm [shape: f32[1,128], index: 7, kind: output, shape index: {}]
  %s8 = sld [smem:[#allocation0]]
  $region38: #{tpu_custom_call.1} parent=0
    _
  %s10 = ssub.s32 1, %s8
  %s11 = scalar_select 0, %s10, %s8
  %v12 = vstv %s6
  %13 = vst [vmem:[#allocation2] sm:$0x1] %v12
  $region1: #{tpu_custom_call.1} parent=0
    #allocation3 [shape = 'u8[512]{0}', space=vmem, size = 0x400, scoped, tag = 'output window, operand 0, single buffered']
    #allocation4 [shape = 's32[1]{0}', space=sflag, size = 0x4, scoped, tag = 'scoped memory for tpu_custom_call.1']
    %14 = vsyncpa [#allocation4], 0
    // Predicated region
    $region2: #{tpu_custom_call.1} parent=1 // pred_check
      _
    $region3: #{tpu_custom_call.1} parent=1 // pred_check_branch
      %16 = sbr.rel (0) target = $region5
    $region4: #{tpu_custom_call.1} parent=1 // pred_region
      _
    $region5: #{tpu_custom_call.1} parent=1 // pred_fallthru
      _
    // Predicated region
    $region6: #{tpu_custom_call.1} parent=1 // pred_check
      _
    $region7: #{tpu_custom_call.1} parent=1 // pred_check_branch
      %18 = sbr.rel (0) target = $region9
    $region8: #{tpu_custom_call.1} parent=1 // pred_region
      _
    $region9: #{tpu_custom_call.1} parent=1 // pred_fallthru
      _
    // Predicated region
    $region10: #{tpu_custom_call.1} parent=1 // pred_check
      _
    $region11: #{tpu_custom_call.1} parent=1 // pred_check_branch
      %20 = sbr.rel (0) target = $region13
    $region12: #{tpu_custom_call.1} parent=1 // pred_region
      _
    $region13: #{tpu_custom_call.1} parent=1 // pred_fallthru
      _
    // Predicated region
    $region14: #{tpu_custom_call.1} parent=1 // pred_check
      _
    $region15: #{tpu_custom_call.1} parent=1 // pred_check_branch
      %22 = sbr.rel (0) target = $region17
    $region16: #{tpu_custom_call.1} parent=1 // pred_region
      _
    $region17: #{tpu_custom_call.1} parent=1 // pred_fallthru
      _
    // Predicated region
    $region18: #{tpu_custom_call.1} parent=1 // pred_check
      _
    $region19: #{tpu_custom_call.1} parent=1 // pred_check_branch
      %24 = sbr.rel (0) target = $region21
    $region20: #{tpu_custom_call.1} parent=1 // pred_region
      _
    $region21: #{tpu_custom_call.1} parent=1 // pred_fallthru
      _
    // Predicated region
    $region22: #{tpu_custom_call.1} parent=1 // pred_check
      _
    $region23: #{tpu_custom_call.1} parent=1 // pred_check_branch
      %26 = sbr.rel (0) target = $region25
    $region24: #{tpu_custom_call.1} parent=1 // pred_region
      _
    $region25: #{tpu_custom_call.1} parent=1 // pred_fallthru
      _
    // Predicated region
    $region26: #{tpu_custom_call.1} parent=1 // pred_check
      _
    $region27: #{tpu_custom_call.1} parent=1 // pred_check_branch
      %28 = sbr.rel (0) target = $region29
    $region28: #{tpu_custom_call.1} parent=1 // pred_region
      _
    $region29: #{tpu_custom_call.1} parent=1 // pred_fallthru
      _
    %v29 = vld [vmem:[%s0] sm:$0xff]
    %v30 = vld [vmem:[%s0 + $0x8] sm:$0xff]
    %v31 = vld [vmem:[%s0 + $0x10] sm:$0xf]
    %v32 = vld [vmem:[%s1] sm:$0xff]
    %v33 = vld [vmem:[%s1 + $0x8] sm:$0xff]
    %v34 = vld [vmem:[%s1 + $0x10] sm:$0xff]
    %v35 = vld [vmem:[%s1 + $0x18] sm:$0xff]
    %v36 = vld [vmem:[%s1 + $0x20] sm:$0xff]
    %v37 = vld [vmem:[%s1 + $0x28] sm:$0xff]
    %v38 = vld [vmem:[%s1 + $0x30] sm:$0x3]
    %v39 = vld [vmem:[%s2] sm:$0xff]
    %v40 = vld [vmem:[%s2 + $0x8] sm:$0xff]
    %v41 = vld [vmem:[%s2 + $0x10] sm:$0xff]
    %v42 = vld [vmem:[%s2 + $0x18] sm:$0xff]
    %v43 = vld [vmem:[%s2 + $0x20] sm:$0xff]
    %v44 = vld [vmem:[%s2 + $0x28] sm:$0xff]
    %v45 = vld [vmem:[%s2 + $0x30] sm:$0x3]
    %47 = vset.pattern.permute.xlu0 0
    %48 = vperm.xlu0 %47, %v39
    %v49 = vpop.permute.xlu0 %48
    %52 = vset.pattern.permute.xlu0 0
    %53 = vperm.xlu0 %52, %v40
    %v54 = vpop.permute.xlu0 %53
    %57 = vset.pattern.permute.xlu0 0
    %58 = vperm.xlu0 %57, %v41
    %v59 = vpop.permute.xlu0 %58
    %62 = vset.pattern.permute.xlu0 0
    %63 = vperm.xlu0 %62, %v42
    %v64 = vpop.permute.xlu0 %63
    %67 = vset.pattern.permute.xlu0 0
    %68 = vperm.xlu0 %67, %v43
    %v69 = vpop.permute.xlu0 %68
    %72 = vset.pattern.permute.xlu0 0
    %73 = vperm.xlu0 %72, %v44
    %v74 = vpop.permute.xlu0 %73
    %77 = vset.pattern.permute.xlu0 0
    %78 = vperm.xlu0 %77, %v45
    %v79 = vpop.permute.xlu0 %78
    %vm81 = vcmask 162816
    %v83 = vsel %vm81, %v32, 0
    %v86 = vsel %vm81, %v33, 0
    %v89 = vsel %vm81, %v34, 0
    %v92 = vsel %vm81, %v35, 0
    %v95 = vsel %vm81, %v36, 0
    %v98 = vsel %vm81, %v37, 0
    %v101 = vsel %vm81, %v38, 0
    %vm103 = vcmask 1043456
    %v105 = vsel %vm103, %v31, 0
    %107 = vmatprep.subr.mxu0 0.0
    %108 = vmatpush1.msra.mxu0 0.0
    %109 = vmatprep.subr.mxu0 0.0
    %110 = vmatpush1.msra.mxu0 0.0
    %111 = vmatprep.subr.mxu0 0.0
    %112 = vmatpush1.msra.mxu0 0.0
    %113 = vmatprep.subr.mxu0 0.0
    %114 = vmatpush1.msra.mxu0 0.0
    %115 = vmatprep.subr.mxu0 0.0
    %116 = vmatpush1.msra.mxu0 0.0
    %117 = vmatprep.subr.mxu0 0.0
    %118 = vmatpush1.msra.mxu0 0.0
    %119 = vmatprep.subr.mxu0 0.0
    %120 = vmatpush1.msra.mxu0 0.0
    %121 = vmatprep.subr.mxu0 0.0
    %122 = vmatpush1.msra.mxu0 0.0
    %123 = vmatprep.subr.mxu0 0.0
    %124 = vmatpush1.msra.mxu0 0.0
    %125 = vmatprep.subr.mxu0 0.0
    %126 = vmatpush1.msra.mxu0 0.0
    %127 = vmatprep.subr.mxu0 0.0
    %128 = vmatpush1.msra.mxu0 0.0
    %129 = vmatprep.subr.mxu0 0.0
    %130 = vmatpush1.msra.mxu0 0.0
    %131 = vmatprep.subr.mxu0 0.0
    %132 = vmatpush1.msra.mxu0 0.0
    %133 = vmatprep.subr.mxu0 0.0
    %134 = vmatpush1.msra.mxu0 %v105
    %135 = vmatprep.subr.mxu0 0.0
    %136 = vmatpush1.msra.mxu0 %v30
    %137 = vmatprep.subr.mxu0 0.0
    %138 = vmatpush1.msra.mxu0 %v29
    %139 = vmatprep.subr.mxu0 0.0
    %140 = vmatpush2.msra.mxu0 0.0
    %141 = vmatprep.subr.mxu0 0.0
    %142 = vmatpush2.msra.mxu0 0.0
    %143 = vmatprep.subr.mxu0 0.0
    %144 = vmatpush2.msra.mxu0 0.0
    %145 = vmatprep.subr.mxu0 0.0
    %146 = vmatpush2.msra.mxu0 0.0
    %147 = vmatprep.subr.mxu0 0.0
    %148 = vmatpush2.msra.mxu0 0.0
    %149 = vmatprep.subr.mxu0 0.0
    %150 = vmatpush2.msra.mxu0 0.0
    %151 = vmatprep.subr.mxu0 0.0
    %152 = vmatpush2.msra.mxu0 0.0
    %153 = vmatprep.subr.mxu0 0.0
    %154 = vmatpush2.msra.mxu0 0.0
    %155 = vmatprep.subr.mxu0 0.0
    %156 = vmatpush2.msra.mxu0 0.0
    %157 = vmatprep.subr.mxu0 0.0
    %158 = vmatpush2.msra.mxu0 0.0
    %159 = vmatprep.subr.mxu0 0.0
    %160 = vmatpush2.msra.mxu0 0.0
    %161 = vmatprep.subr.mxu0 0.0
    %162 = vmatpush2.msra.mxu0 0.0
    %163 = vmatprep.subr.mxu0 0.0
    %164 = vmatpush2.msra.mxu0 0.0
    %165 = vmatprep.subr.mxu0 0.0
    %166 = vmatpush2.msra.mxu0 0.0
    %167 = vmatprep.subr.mxu0 0.0
    %168 = vmatpush2.msra.mxu0 0.0
    %169 = vmatprep.subr.mxu0 0.0
    %170 = vmatpush2.msra.mxu0 0.0
    %171 = vmatprep.mubr.f32.mxu0 0.0
    %172 = vmatmul.mubr.f32.gmra.mxu0 %v83
    %v173 = vpop.f32.mrf.mxu0
    %v174 = vadd.f32 %v49, %v173
    %v175 = vpop.f32.mrf.mxu0
    %176 = vmatprep.mubr.f32.mxu0 0.0
    %177 = vmatmul.mubr.f32.gmra.mxu0 %v86
    %v178 = vpop.f32.mrf.mxu0
    %v179 = vadd.f32 %v54, %v178
    %v180 = vpop.f32.mrf.mxu0
    %181 = vmatprep.mubr.f32.mxu0 0.0
    %182 = vmatmul.mubr.f32.gmra.mxu0 %v89
    %v183 = vpop.f32.mrf.mxu0
    %v184 = vadd.f32 %v59, %v183
    %v185 = vpop.f32.mrf.mxu0
    %186 = vmatprep.mubr.f32.mxu0 0.0
    %187 = vmatmul.mubr.f32.gmra.mxu0 %v92
    %v188 = vpop.f32.mrf.mxu0
    %v189 = vadd.f32 %v64, %v188
    %v190 = vpop.f32.mrf.mxu0
    %191 = vmatprep.mubr.f32.mxu0 0.0
    %192 = vmatmul.mubr.f32.gmra.mxu0 %v95
    %v193 = vpop.f32.mrf.mxu0
    %v194 = vadd.f32 %v69, %v193
    %v195 = vpop.f32.mrf.mxu0
    %196 = vmatprep.mubr.f32.mxu0 0.0
    %197 = vmatmul.mubr.f32.gmra.mxu0 %v98
    %v198 = vpop.f32.mrf.mxu0
    %v199 = vadd.f32 %v74, %v198
    %v200 = vpop.f32.mrf.mxu0
    %201 = vmatprep.mubr.f32.mxu0 0.0
    %202 = vmatmul.mubr.f32.gmra.mxu0 %v101
    %v203 = vpop.f32.mrf.mxu0
    %v204 = vadd.f32 %v79, %v203
    %v205 = vpop.f32.mrf.mxu0
    %206 = vdwg.mxu0
    %v207 = vmax.f32 %v174, 0.0
    %v208 = vmax.f32 %v179, 0.0
    %v209 = vmax.f32 %v184, 0.0
    %v210 = vmax.f32 %v189, 0.0
    %v211 = vmax.f32 %v194, 0.0
    %v212 = vmax.f32 %v199, 0.0
    %v213 = vmax.f32 %v204, 0.0
    %v214 = vld [vmem:[%s3] sm:$0xff]
    %v215 = vld [vmem:[%s3 + $0x8] sm:$0xff]
    %v216 = vld [vmem:[%s3 + $0x10] sm:$0xff]
    %v217 = vld [vmem:[%s3 + $0x18] sm:$0xff]
    %v218 = vld [vmem:[%s3 + $0x20] sm:$0xff]
    %v219 = vld [vmem:[%s3 + $0x28] sm:$0xff]
    %v220 = vld [vmem:[%s3 + $0x30] sm:$0x3]
    %v221 = vld [vmem:[%s4] sm:$0xff]
    %v222 = vld [vmem:[%s4 + $0x8] sm:$0xff]
    %v223 = vld [vmem:[%s4 + $0x10] sm:$0xff]
    %v224 = vld [vmem:[%s4 + $0x18] sm:$0xff]
    %v225 = vld [vmem:[%s4 + $0x20] sm:$0xff]
    %v226 = vld [vmem:[%s4 + $0x28] sm:$0xff]
    %v227 = vld [vmem:[%s4 + $0x30] sm:$0x3]
    %229 = vset.pattern.permute.xlu0 0
    %230 = vperm.xlu0 %229, %v221
    %v231 = vpop.permute.xlu0 %230
    %234 = vset.pattern.permute.xlu0 0
    %235 = vperm.xlu0 %234, %v222
    %v236 = vpop.permute.xlu0 %235
    %239 = vset.pattern.permute.xlu0 0
    %240 = vperm.xlu0 %239, %v223
    %v241 = vpop.permute.xlu0 %240
    %244 = vset.pattern.permute.xlu0 0
    %245 = vperm.xlu0 %244, %v224
    %v246 = vpop.permute.xlu0 %245
    %249 = vset.pattern.permute.xlu0 0
    %250 = vperm.xlu0 %249, %v225
    %v251 = vpop.permute.xlu0 %250
    %254 = vset.pattern.permute.xlu0 0
    %255 = vperm.xlu0 %254, %v226
    %v256 = vpop.permute.xlu0 %255
    %259 = vset.pattern.permute.xlu0 0
    %260 = vperm.xlu0 %259, %v227
    %v261 = vpop.permute.xlu0 %260
    %vm263 = vcmask 408576
    %v265 = vsel %vm263, %v214, 0
    %v268 = vsel %vm263, %v215, 0
    %v271 = vsel %vm263, %v216, 0
    %v274 = vsel %vm263, %v217, 0
    %v277 = vsel %vm263, %v218, 0
    %v280 = vsel %vm263, %v219, 0
    %v283 = vsel %vm263, %v220, 0
    %vm285 = vcmask 1041408
    %v287 = vsel %vm285, %v213, 0
    %289 = vmatprep.subr.mxu0 0.0
    %290 = vmatpush1.msra.mxu0 0.0
    %291 = vmatprep.subr.mxu0 0.0
    %292 = vmatpush1.msra.mxu0 0.0
    %293 = vmatprep.subr.mxu0 0.0
    %294 = vmatpush1.msra.mxu0 0.0
    %295 = vmatprep.subr.mxu0 0.0
    %296 = vmatpush1.msra.mxu0 0.0
    %297 = vmatprep.subr.mxu0 0.0
    %298 = vmatpush1.msra.mxu0 0.0
    %299 = vmatprep.subr.mxu0 0.0
    %300 = vmatpush1.msra.mxu0 0.0
    %301 = vmatprep.subr.mxu0 0.0
    %302 = vmatpush1.msra.mxu0 0.0
    %303 = vmatprep.subr.mxu0 0.0
    %304 = vmatpush1.msra.mxu0 0.0
    %305 = vmatprep.subr.mxu0 0.0
    %306 = vmatpush1.msra.mxu0 0.0
    %307 = vmatprep.subr.mxu0 0.0
    %308 = vmatpush1.msra.mxu0 %v287
    %309 = vmatprep.subr.mxu0 0.0
    %310 = vmatpush1.msra.mxu0 %v212
    %311 = vmatprep.subr.mxu0 0.0
    %312 = vmatpush1.msra.mxu0 %v211
    %313 = vmatprep.subr.mxu0 0.0
    %314 = vmatpush1.msra.mxu0 %v210
    %315 = vmatprep.subr.mxu0 0.0
    %316 = vmatpush1.msra.mxu0 %v209
    %317 = vmatprep.subr.mxu0 0.0
    %318 = vmatpush1.msra.mxu0 %v208
    %319 = vmatprep.subr.mxu0 0.0
    %320 = vmatpush1.msra.mxu0 %v207
    %321 = vmatprep.subr.mxu0 0.0
    %322 = vmatpush2.msra.mxu0 0.0
    %323 = vmatprep.subr.mxu0 0.0
    %324 = vmatpush2.msra.mxu0 0.0
    %325 = vmatprep.subr.mxu0 0.0
    %326 = vmatpush2.msra.mxu0 0.0
    %327 = vmatprep.subr.mxu0 0.0
    %328 = vmatpush2.msra.mxu0 0.0
    %329 = vmatprep.subr.mxu0 0.0
    %330 = vmatpush2.msra.mxu0 0.0
    %331 = vmatprep.subr.mxu0 0.0
    %332 = vmatpush2.msra.mxu0 0.0
    %333 = vmatprep.subr.mxu0 0.0
    %334 = vmatpush2.msra.mxu0 0.0
    %335 = vmatprep.subr.mxu0 0.0
    %336 = vmatpush2.msra.mxu0 0.0
    %337 = vmatprep.subr.mxu0 0.0
    %338 = vmatpush2.msra.mxu0 0.0
    %339 = vmatprep.subr.mxu0 0.0
    %340 = vmatpush2.msra.mxu0 0.0
    %341 = vmatprep.subr.mxu0 0.0
    %342 = vmatpush2.msra.mxu0 0.0
    %343 = vmatprep.subr.mxu0 0.0
    %344 = vmatpush2.msra.mxu0 0.0
    %345 = vmatprep.subr.mxu0 0.0
    %346 = vmatpush2.msra.mxu0 0.0
    %347 = vmatprep.subr.mxu0 0.0
    %348 = vmatpush2.msra.mxu0 0.0
    %349 = vmatprep.subr.mxu0 0.0
    %350 = vmatpush2.msra.mxu0 0.0
    %351 = vmatprep.subr.mxu0 0.0
    %352 = vmatpush2.msra.mxu0 0.0
    %353 = vmatprep.mubr.f32.mxu0 0.0
    %354 = vmatmul.mubr.f32.gmra.mxu0 %v265
    %v355 = vpop.f32.mrf.mxu0
    %v356 = vadd.f32 %v231, %v355
    %v357 = vpop.f32.mrf.mxu0
    %358 = vmatprep.mubr.f32.mxu0 0.0
    %359 = vmatmul.mubr.f32.gmra.mxu0 %v268
    %v360 = vpop.f32.mrf.mxu0
    %v361 = vadd.f32 %v236, %v360
    %v362 = vpop.f32.mrf.mxu0
    %363 = vmatprep.mubr.f32.mxu0 0.0
    %364 = vmatmul.mubr.f32.gmra.mxu0 %v271
    %v365 = vpop.f32.mrf.mxu0
    %v366 = vadd.f32 %v241, %v365
    %v367 = vpop.f32.mrf.mxu0
    %368 = vmatprep.mubr.f32.mxu0 0.0
    %369 = vmatmul.mubr.f32.gmra.mxu0 %v274
    %v370 = vpop.f32.mrf.mxu0
    %v371 = vadd.f32 %v246, %v370
    %v372 = vpop.f32.mrf.mxu0
    %373 = vmatprep.mubr.f32.mxu0 0.0
    %374 = vmatmul.mubr.f32.gmra.mxu0 %v277
    %v375 = vpop.f32.mrf.mxu0
    %v376 = vadd.f32 %v251, %v375
    %v377 = vpop.f32.mrf.mxu0
    %378 = vmatprep.mubr.f32.mxu0 0.0
    %379 = vmatmul.mubr.f32.gmra.mxu0 %v280
    %v380 = vpop.f32.mrf.mxu0
    %v381 = vadd.f32 %v256, %v380
    %v382 = vpop.f32.mrf.mxu0
    %383 = vmatprep.mubr.f32.mxu0 0.0
    %384 = vmatmul.mubr.f32.gmra.mxu0 %v283
    %v385 = vpop.f32.mrf.mxu0
    %v386 = vadd.f32 %v261, %v385
    %v387 = vpop.f32.mrf.mxu0
    %388 = vdwg.mxu0
    %v389 = vmax.f32 %v356, 0.0
    %v390 = vmax.f32 %v361, 0.0
    %v391 = vmax.f32 %v366, 0.0
    %v392 = vmax.f32 %v371, 0.0
    %v393 = vmax.f32 %v376, 0.0
    %v394 = vmax.f32 %v381, 0.0
    %v395 = vmax.f32 %v386, 0.0
    %v396 = vld [vmem:[%s5] sm:$0x1]
    %v397 = vld [vmem:[#allocation2] sm:$0x1]
    %399 = vset.pattern.permute.xlu0 0
    %400 = vperm.xlu0 %399, %v397
    %v401 = vpop.permute.xlu0 %400
    %v403 = vlaneseq
    %v404 = vshrl.u32 %v403, 7
    %v405 = vsub.s32 0, %v404
    %v406 = vrot.slane %v401, %v405
    %v408 = vsel %vm263, %v396, 0
    %v411 = vsel %vm285, %v395, 0
    %413 = vmatprep.subr.mxu0 0.0
    %414 = vmatpush1.msra.mxu0 0.0
    %415 = vmatprep.subr.mxu0 0.0
    %416 = vmatpush1.msra.mxu0 0.0
    %417 = vmatprep.subr.mxu0 0.0
    %418 = vmatpush1.msra.mxu0 0.0
    %419 = vmatprep.subr.mxu0 0.0
    %420 = vmatpush1.msra.mxu0 0.0
    %421 = vmatprep.subr.mxu0 0.0
    %422 = vmatpush1.msra.mxu0 0.0
    %423 = vmatprep.subr.mxu0 0.0
    %424 = vmatpush1.msra.mxu0 0.0
    %425 = vmatprep.subr.mxu0 0.0
    %426 = vmatpush1.msra.mxu0 0.0
    %427 = vmatprep.subr.mxu0 0.0
    %428 = vmatpush1.msra.mxu0 0.0
    %429 = vmatprep.subr.mxu0 0.0
    %430 = vmatpush1.msra.mxu0 0.0
    %431 = vmatprep.subr.mxu0 0.0
    %432 = vmatpush1.msra.mxu0 %v411
    %433 = vmatprep.subr.mxu0 0.0
    %434 = vmatpush1.msra.mxu0 %v394
    %435 = vmatprep.subr.mxu0 0.0
    %436 = vmatpush1.msra.mxu0 %v393
    %437 = vmatprep.subr.mxu0 0.0
    %438 = vmatpush1.msra.mxu0 %v392
    %439 = vmatprep.subr.mxu0 0.0
    %440 = vmatpush1.msra.mxu0 %v391
    %441 = vmatprep.subr.mxu0 0.0
    %442 = vmatpush1.msra.mxu0 %v390
    %443 = vmatprep.subr.mxu0 0.0
    %444 = vmatpush1.msra.mxu0 %v389
    %445 = vmatprep.subr.mxu0 0.0
    %446 = vmatpush2.msra.mxu0 0.0
    %447 = vmatprep.subr.mxu0 0.0
    %448 = vmatpush2.msra.mxu0 0.0
    %449 = vmatprep.subr.mxu0 0.0
    %450 = vmatpush2.msra.mxu0 0.0
    %451 = vmatprep.subr.mxu0 0.0
    %452 = vmatpush2.msra.mxu0 0.0
    %453 = vmatprep.subr.mxu0 0.0
    %454 = vmatpush2.msra.mxu0 0.0
    %455 = vmatprep.subr.mxu0 0.0
    %456 = vmatpush2.msra.mxu0 0.0
    %457 = vmatprep.subr.mxu0 0.0
    %458 = vmatpush2.msra.mxu0 0.0
    %459 = vmatprep.subr.mxu0 0.0
    %460 = vmatpush2.msra.mxu0 0.0
    %461 = vmatprep.subr.mxu0 0.0
    %462 = vmatpush2.msra.mxu0 0.0
    %463 = vmatprep.subr.mxu0 0.0
    %464 = vmatpush2.msra.mxu0 0.0
    %465 = vmatprep.subr.mxu0 0.0
    %466 = vmatpush2.msra.mxu0 0.0
    %467 = vmatprep.subr.mxu0 0.0
    %468 = vmatpush2.msra.mxu0 0.0
    %469 = vmatprep.subr.mxu0 0.0
    %470 = vmatpush2.msra.mxu0 0.0
    %471 = vmatprep.subr.mxu0 0.0
    %472 = vmatpush2.msra.mxu0 0.0
    %473 = vmatprep.subr.mxu0 0.0
    %474 = vmatpush2.msra.mxu0 0.0
    %475 = vmatprep.subr.mxu0 0.0
    %476 = vmatpush2.msra.mxu0 0.0
    %477 = vmatprep.mubr.f32.mxu0 0.0
    %478 = vmatmul.mubr.f32.gmra.mxu0 %v408
    %v479 = vpop.f32.mrf.mxu0
    %v480 = vadd.f32 %v406, %v479
    %v481 = vpop.f32.mrf.mxu0
    %482 = vdwg.mxu0
    %v483 = vsub.f32 0.0, %v480
    %v484 = vmul.f32 %v483, 1.442695
    %v485 = vpow.pop %v484
    %v486 = vadd.f32 %v485, 1.0
    %v487 = vrcp.pop %v486
    %488 = vst [vmem:[#allocation3] sm:$0x1] %v487
    // Predicated region
    $region30: #{tpu_custom_call.1} parent=1 // pred_check
      _
    $region31: #{tpu_custom_call.1} parent=1 // pred_check_branch
      %490 = sbr.rel (0) target = $region33
    $region32: #{tpu_custom_call.1} parent=1 // pred_region
      %s492 = ssub.s32 16, 16
      %493 = vsyncadd [#allocation4], %s492
      %s495 = sshll.u32 [#allocation3], 4
      %s496 = int_to_ptr.vmem [resolvable:$true] %s495
      %498 = dma.vmem_to_hbm [thread:$0]  %s496, 16, %s7, [#allocation4]
    $region33: #{tpu_custom_call.1} parent=1 // pred_fallthru
      _
    // Predicated region
    $region34: #{tpu_custom_call.1} parent=1 // pred_check
      _
    $region35: #{tpu_custom_call.1} parent=1 // pred_check_branch
      %500 = sbr.rel (0) target = $region37
    $region36: #{tpu_custom_call.1} parent=1 // pred_region
      %501 = dma.done [#allocation4], 16
    $region37: #{tpu_custom_call.1} parent=1 // pred_fallthru
      _
    %502 = vsyncpa [#allocation4], 1

</llo_original>
